<compile_context>
chip_gen: v7x
topology: tpu7x:2x2x1
jax: 0.10.0
libtpu: 0.0.40
codegen_flags: <defaults>
</compile_context>

<pallas_src>
import functools

import jax
import jax.numpy as jnp
import numpy as np
from jax.experimental import pallas as pl
from jax.experimental.pallas import tpu as pltpu


def _pos_enc_kernel(x_ref, w1_ref, w2_ref, o_ref):
    # x: (C_in, tm) channels-first tile of coords_space = center - neighbor
    x = x_ref[...]
    # 1x1 conv (no bias) == matmul over the channel axis (channels-first: W @ x)
    h = jnp.dot(w1_ref[...], x, preferred_element_type=jnp.float32)   # (C_hid, tm)
    h = jnp.maximum(h, 0.0)                                           # ReLU
    o = jnp.dot(w2_ref[...], h, preferred_element_type=jnp.float32)   # (C_out, tm)
    o_ref[...] = o.astype(o_ref.dtype)


@functools.partial(jax.jit, static_argnames=("tm",))
def position_encoding(coords, knn_indices, w1_conv, w2_conv, *, tm=4096):
    """
    coords:       (B, C_in, N)  float32
    knn_indices:  (B, N, K)     int32
    w1_conv:      (C_hid, C_in, 1, 1)  -- first 1x1 conv weight (no bias)
    w2_conv:      (C_out, C_hid, 1, 1) -- second 1x1 conv weight (no bias)
    returns:      (B, C_out, N, K)  float32  (NCHW, same as PyTorch)
    """
    B, C_in, N = coords.shape
    K = knn_indices.shape[-1]
    C_hid = w1_conv.shape[0]
    C_out = w2_conv.shape[0]
    NK = N * K

    # --- single fused XLA pass: gather + (center - neighbor), channels-first ---
    idx = jnp.broadcast_to(knn_indices.reshape(B, 1, NK), (B, C_in, NK))
    knn_coords = jnp.take_along_axis(coords, idx, axis=2).reshape(B, C_in, N, K)
    # localize(coords, knn) * -1  ==  coords[..., None] - knn_coords
    coords_space = (coords[:, :, :, None] - knn_coords).reshape(B, C_in, NK)

    # conv weights -> matmul weights (channels-first: out = W @ x)
    w1 = w1_conv[:, :, 0, 0].astype(jnp.float32)   # (C_hid, C_in)
    w2 = w2_conv[:, :, 0, 0].astype(jnp.float32)   # (C_out, C_hid)

    # --- tile the flattened point (lane) axis; tile must be a multiple of 128 ---
    nk128 = ((NK + 127) // 128) * 128
    tm_eff = max(128, (min(tm, nk128) // 128) * 128)
    NK_pad = ((NK + tm_eff - 1) // tm_eff) * tm_eff
    if NK_pad != NK:
        coords_space = jnp.pad(coords_space, ((0, 0), (0, 0), (0, NK_pad - NK)))

    grid = (B, NK_pad // tm_eff)

    cost = pl.CostEstimate(
        flops=2 * B * NK_pad * (C_in * C_hid + C_hid * C_out),
        transcendentals=0,
        bytes_accessed=4 * B * NK_pad * (C_in + C_out)
        + 4 * (C_in * C_hid + C_hid * C_out),
    )

    out_flat = pl.pallas_call(
        _pos_enc_kernel,
        out_shape=jax.ShapeDtypeStruct((B, C_out, NK_pad), jnp.float32),
        grid_spec=pl.GridSpec(
            grid=grid,
            in_specs=[
                # coords_space: batch squeezed, (C_in, tm) channels-first tile
                pl.BlockSpec((None, C_in, tm_eff), lambda b, j: (b, 0, j)),
                # weights: fully resident, same block every step
                pl.BlockSpec((C_hid, C_in), lambda b, j: (0, 0)),
                pl.BlockSpec((C_out, C_hid), lambda b, j: (0, 0)),
            ],
            out_specs=pl.BlockSpec((None, C_out, tm_eff), lambda b, j: (b, 0, j)),
        ),
        compiler_params=pltpu.CompilerParams(
            dimension_semantics=("parallel", "parallel"),
        ),
        cost_estimate=cost,
    )(coords_space, w1, w2)

    # (B, C_out, N*K) -> (B, C_out, N, K): pure metadata reshape, no transpose.
    return out_flat[:, :, :NK].reshape(B, C_out, N, K)


def _reference(coords, knn_indices, w1_conv, w2_conv):
    """Pure-JAX reference matching the PyTorch forward."""
    B, C_in, N = coords.shape
    K = knn_indices.shape[-1]
    idx = jnp.broadcast_to(knn_indices.reshape(B, 1, N * K), (B, C_in, N * K))
    knn_coords = jnp.take_along_axis(coords, idx, axis=2).reshape(B, C_in, N, K)
    coords_space = (knn_coords - coords[:, :, :, None]) * -1.0
    w1 = w1_conv[:, :, 0, 0]
    w2 = w2_conv[:, :, 0, 0]
    h = jnp.maximum(jnp.einsum("oc,bcnk->bonk", w1, coords_space), 0.0)
    return jnp.einsum("oh,bhnk->bonk", w2, h)


if __name__ == "__main__":
    key = jax.random.PRNGKey(0)
    k_coords, k_idx, k_w1, k_w2 = jax.random.split(key, 4)

    # -------- main test: B=2, C_in=3, N=16, K=8, C_out=32 --------
    B, C_in, N, K, C_out = 2, 3, 16, 8, 32

    coords = jax.random.normal(k_coords, (B, C_in, N), dtype=jnp.float32)
    knn_indices = jax.random.randint(k_idx, (B, N, K), 0, N, dtype=jnp.int32)

    # deterministic synthetic Conv2d weights: (C_out, C_in, 1, 1), no bias
    w1_conv = 0.1 * jax.random.normal(k_w1, (C_out, C_in, 1, 1), dtype=jnp.float32)
    w2_conv = 0.1 * jax.random.normal(k_w2, (C_out, C_out, 1, 1), dtype=jnp.float32)

    out = position_encoding(coords, knn_indices, w1_conv, w2_conv)
    out = jax.block_until_ready(out)
    ref = _reference(coords, knn_indices, w1_conv, w2_conv)
    np.testing.assert_allclose(np.asarray(out), np.asarray(ref), rtol=1e-5, atol=1e-5)
    assert out.shape == (B, C_out, N, K)

    # -------- second test: N*K not a multiple of 128 (exercises padding) --------
    N2, K2 = 20, 8
    coords2 = jax.random.normal(k_coords, (B, C_in, N2), dtype=jnp.float32)
    knn_indices2 = jax.random.randint(k_idx, (B, N2, K2), 0, N2, dtype=jnp.int32)
    out2 = position_encoding(coords2, knn_indices2, w1_conv, w2_conv)
    out2 = jax.block_until_ready(out2)
    ref2 = _reference(coords2, knn_indices2, w1_conv, w2_conv)
    np.testing.assert_allclose(np.asarray(out2), np.asarray(ref2), rtol=1e-5, atol=1e-5)
    assert out2.shape == (B, C_out, N2, K2)

    print("KERNEL_OK")
</pallas_src>

<mosaic_0001>
module attributes {stable_mosaic.version = 11 : i64} {
  func.func @_pos_enc_kernel(%arg0: i32, %arg1: i32, %arg2: memref<1x3x128xf32, #tpu.memory_space<vmem>>, %arg3: memref<32x3xf32, #tpu.memory_space<vmem>>, %arg4: memref<32x32xf32, #tpu.memory_space<vmem>>, %arg5: memref<1x32x128xf32, #tpu.memory_space<vmem>>) attributes {dimension_semantics = [#tpu.dimension_semantics<parallel>, #tpu.dimension_semantics<parallel>], iteration_bounds = array<i64: 2, 1>, scalar_prefetch = 0 : i64, scratch_operands = 0 : i64, tpu.core_type = #tpu.core_type<tc>, window_params = [{transform_indices = @transform_0, window_bounds = array<i64: 1, 3, 128>}, {pipeline_mode = #tpu.pipeline_mode<synchronous>, transform_indices = @transform_1, window_bounds = array<i64: 32, 3>}, {pipeline_mode = #tpu.pipeline_mode<synchronous>, transform_indices = @transform_2, window_bounds = array<i64: 32, 32>}, {transform_indices = @transform_3, window_bounds = array<i64: 1, 32, 128>}]} {
    %c0 = arith.constant 0 : index
    %c0_0 = arith.constant 0 : index
    %c0_1 = arith.constant 0 : index
    %0 = vector.load %arg2[%c0, %c0_0, %c0_1] : memref<1x3x128xf32, #tpu.memory_space<vmem>>, vector<1x3x128xf32>
    %1 = vector.shape_cast %0 : vector<1x3x128xf32> to vector<3x128xf32>
    %c0_2 = arith.constant 0 : index
    %c0_3 = arith.constant 0 : index
    %2 = vector.load %arg3[%c0_2, %c0_3] : memref<32x3xf32, #tpu.memory_space<vmem>>, vector<32x3xf32>
    %cst = arith.constant dense<0.000000e+00> : vector<32x128xf32>
    %3 = tpu.matmul %2, %1, %cst {dimension_numbers = #tpu.dot_dimension_numbers<[1], [0], [0], [1], [0, 0, 1, 1], [], []>} : vector<32x3xf32>, vector<3x128xf32>, vector<32x128xf32> -> vector<32x128xf32>
    %cst_4 = arith.constant 0.000000e+00 : f32
    %4 = vector.broadcast %cst_4 : f32 to vector<32x128xf32>
    %5 = arith.maximumf %3, %4 : vector<32x128xf32>
    %c0_5 = arith.constant 0 : index
    %c0_6 = arith.constant 0 : index
    %6 = vector.load %arg4[%c0_5, %c0_6] : memref<32x32xf32, #tpu.memory_space<vmem>>, vector<32x32xf32>
    %cst_7 = arith.constant dense<0.000000e+00> : vector<32x128xf32>
    %7 = tpu.matmul %6, %5, %cst_7 {dimension_numbers = #tpu.dot_dimension_numbers<[1], [0], [0], [1], [0, 0, 1, 1], [], []>} : vector<32x32xf32>, vector<32x128xf32>, vector<32x128xf32> -> vector<32x128xf32>
    %c0_8 = arith.constant 0 : index
    %c0_9 = arith.constant 0 : index
    %c0_10 = arith.constant 0 : index
    %8 = vector.load %arg5[%c0_8, %c0_9, %c0_10] : memref<1x32x128xf32, #tpu.memory_space<vmem>>, vector<1x32x128xf32>
    %9 = vector.shape_cast %8 : vector<1x32x128xf32> to vector<32x128xf32>
    %10 = vector.shape_cast %7 : vector<32x128xf32> to vector<1x32x128xf32>
    tpu.vector_store %arg5[%c0_8, %c0_9, %c0_10], %10 {strides = array<i32>} : memref<1x32x128xf32, #tpu.memory_space<vmem>>, vector<1x32x128xf32>,
    return
  }
  func.func @transform_0(%arg0: i32, %arg1: i32) -> (i32, i32, i32) {
    %c0_i32 = arith.constant 0 : i32
    %c0_i32_0 = arith.constant 0 : i32
    return %arg0, %c0_i32, %arg1 : i32, i32, i32
  }
  func.func @transform_1(%arg0: i32, %arg1: i32) -> (i32, i32) {
    %c0_i32 = arith.constant 0 : i32
    %c0_i32_0 = arith.constant 0 : i32
    %c0_i32_1 = arith.constant 0 : i32
    return %c0_i32, %c0_i32_0 : i32, i32
  }
  func.func @transform_2(%arg0: i32, %arg1: i32) -> (i32, i32) {
    %c0_i32 = arith.constant 0 : i32
    %c0_i32_0 = arith.constant 0 : i32
    %c0_i32_1 = arith.constant 0 : i32
    return %c0_i32, %c0_i32_0 : i32, i32
  }
  func.func @transform_3(%arg0: i32, %arg1: i32) -> (i32, i32, i32) {
    %c0_i32 = arith.constant 0 : i32
    %c0_i32_0 = arith.constant 0 : i32
    return %arg0, %c0_i32, %arg1 : i32, i32, i32
  }
}

</mosaic_0001>

<llo_original>
// kernel: position_encoding.1
$region0: #{position_encoding.1}
  #allocation0 [shape = 'u32[]', space=smem, size = 0x4, offset = 0x4, fixed_abs, tag = 'smem constant byte address 0x4 - core index']
  #allocation1 [shape = 'u32[144,128]{1,0:T(1,128)}', space=vmem, size = 0x12000, scoped, tag = 'internal scratch']
  %s0 = inlined_call_operand.vmem [shape: f32[2,3,128], index: 0, kind: input, shape index: {}]
  %s1 = inlined_call_operand.vmem [shape: f32[32,3], index: 1, kind: input, shape index: {}]
  %s2 = inlined_call_operand.vmem [shape: f32[32,32], index: 2, kind: input, shape index: {}]
  %s3 = inlined_call_operand.vmem [shape: f32[2,32,128], index: 3, kind: output, shape index: {}]
  %s4 = sld [smem:[#allocation0]]
  $region45: #{position_encoding.1} parent=0
    _
  %s6 = ssub.s32 1, %s4
  %s7 = scalar_select 0, %s6, %s4
  loop: start=0, step=1, limit=4
  $region2: #{position_encoding.1} parent=0 // loop_pre_header
    _
  $region3: #{position_encoding.1} parent=0 // loop_header
    %s9 = sphi 0, %s13
    %p10 = scmp.ge.s32.totalorder %s9, 4
    %s16 = sphi 0, %s28
    %s17 = sphi 0, %s24
    %s18 = sphi 0, %s16
    %s19 = sphi 0, %s17
    %s20 = sphi 0, %s18
    %s21 = sphi 0, %s19
    %s33 = sphi 0, %s35
    %s36 = sphi 0, %s33
    %s37 = sphi 0, %s36
    %s53 = sphi 0, %s37
    %s57 = sphi 0, %s57
    %s59 = sphi 0, %s57
    %s60 = sphi 0, %s59
    %s74 = sphi 0, %s60
    %s78 = sphi 0, %s78
    %s80 = sphi 0, %s78
    %s81 = sphi 0, %s80
    %s95 = sphi 0, %s81
    %s103 = sphi 0, %s105
    %s106 = sphi 0, %s103
    %s107 = sphi 0, %s106
    %s123 = sphi 0, %s107
  $region4: #{position_encoding.1} parent=0 // loop_header_branch
    %12 = sbr.rel (%p10) target = $region8
  $region5: #{position_encoding.1} parent=0 // loop_body
    %s14 = ssub.s32 %s9, 1
    %s15 = ssub.s32 %s9, 2
    %s22 = sadd.s32 1, %s17
    %p23 = scmp.ge.s32.totalorder %s22, 1
    %s24 = scalar_select %p23, 0, %s22
    %s25 = sadd.s32 1, %s16
    %s26 = scalar_select %p23, %s25, %s16
    %p27 = scmp.ge.s32.totalorder %s26, 2
    %s28 = scalar_select %p27, 0, %s26
    %s29 = ssub.s32 %s16, %s28
    %s30 = ssub.s32 %s17, %s24
    %s31 = sor.u32 %s29, %s30
    %p32 = scmp.eq.s32.totalorder %s31, 0
    %s34 = sadd.s32 %s33, 1
    %s35 = scalar_select %p32, %s33, %s34
    %p38 = pneg %p32
    %p39 = scmp.eq.s32.totalorder %s9, 1
    %p40 = por %p38, %p39
    %p41 = scmp.ne.s32.totalorder %s33, %s36
    %p42 = scmp.eq.s32.totalorder %s9, 0
    %p43 = por %p41, %p42
    %p44 = scmp.ne.s32.totalorder %s33, %s36
    %p45 = scmp.eq.s32.totalorder %s14, 1
    %p46 = por %p44, %p45
    %p47 = scmp.ne.s32.totalorder %s36, %s37
    %p48 = scmp.eq.s32.totalorder %s14, 0
    %p49 = por %p47, %p48
    %p50 = scmp.ne.s32.totalorder %s36, %s37
    %p51 = scmp.eq.s32.totalorder %s15, 1
    %p52 = por %p50, %p51
    %p54 = scmp.ne.s32.totalorder %s37, %s53
    %p55 = scmp.eq.s32.totalorder %s15, 0
    %p56 = por %p54, %p55
    %s58 = sadd.s32 %s57, 1
    %p61 = scmp.eq.s32.totalorder %s9, 1
    %p62 = scmp.ne.s32.totalorder %s57, %s59
    %p63 = scmp.eq.s32.totalorder %s9, 0
    %p64 = por %p62, %p63
    %p65 = scmp.ne.s32.totalorder %s57, %s59
    %p66 = scmp.eq.s32.totalorder %s14, 1
    %p67 = por %p65, %p66
    %p68 = scmp.ne.s32.totalorder %s59, %s60
    %p69 = scmp.eq.s32.totalorder %s14, 0
    %p70 = por %p68, %p69
    %p71 = scmp.ne.s32.totalorder %s59, %s60
    %p72 = scmp.eq.s32.totalorder %s15, 1
    %p73 = por %p71, %p72
    %p75 = scmp.ne.s32.totalorder %s60, %s74
    %p76 = scmp.eq.s32.totalorder %s15, 0
    %p77 = por %p75, %p76
    %s79 = sadd.s32 %s78, 1
    %p82 = scmp.eq.s32.totalorder %s9, 1
    %p83 = scmp.ne.s32.totalorder %s78, %s80
    %p84 = scmp.eq.s32.totalorder %s9, 0
    %p85 = por %p83, %p84
    %p86 = scmp.ne.s32.totalorder %s78, %s80
    %p87 = scmp.eq.s32.totalorder %s14, 1
    %p88 = por %p86, %p87
    %p89 = scmp.ne.s32.totalorder %s80, %s81
    %p90 = scmp.eq.s32.totalorder %s14, 0
    %p91 = por %p89, %p90
    %p92 = scmp.ne.s32.totalorder %s80, %s81
    %p93 = scmp.eq.s32.totalorder %s15, 1
    %p94 = por %p92, %p93
    %p96 = scmp.ne.s32.totalorder %s81, %s95
    %p97 = scmp.eq.s32.totalorder %s15, 0
    %p98 = por %p96, %p97
    %s99 = ssub.s32 %s16, %s28
    %s100 = ssub.s32 %s17, %s24
    %s101 = sor.u32 %s99, %s100
    %p102 = scmp.eq.s32.totalorder %s101, 0
    %s104 = sadd.s32 %s103, 1
    %s105 = scalar_select %p102, %s103, %s104
    %p108 = pneg %p102
    %p109 = scmp.eq.s32.totalorder %s9, 1
    %p110 = por %p108, %p109
    %p111 = scmp.ne.s32.totalorder %s103, %s106
    %p112 = scmp.eq.s32.totalorder %s9, 0
    %p113 = por %p111, %p112
    %p114 = scmp.ne.s32.totalorder %s103, %s106
    %p115 = scmp.eq.s32.totalorder %s14, 1
    %p116 = por %p114, %p115
    %p117 = scmp.ne.s32.totalorder %s106, %s107
    %p118 = scmp.eq.s32.totalorder %s14, 0
    %p119 = por %p117, %p118
    %p120 = scmp.ne.s32.totalorder %s106, %s107
    %p121 = scmp.eq.s32.totalorder %s15, 1
    %p122 = por %p120, %p121
    %p124 = scmp.ne.s32.totalorder %s107, %s123
    %p125 = scmp.eq.s32.totalorder %s15, 0
    %p126 = por %p124, %p125
    %p127 = scmp.le.s32.totalorder 1, %s9
    %p128 = scmp.lt.s32.totalorder %s9, 3
    %p129 = pnand %p127, %p128
    %p130 = pneg %p129
    // Predicated region
    $region9: #{position_encoding.1} parent=5 // pred_check
      _
    $region10: #{position_encoding.1} parent=5 // pred_check_branch
      %132 = sbr.rel (%p129) target = $region12
    $region11: #{position_encoding.1} parent=5 // pred_region
      %s133 = ssub.s32 %s9, 1
      // Predicated region
      $region13: #{position_encoding.1} parent=11 // pred_check
        %p134 = pneg %p70
      $region14: #{position_encoding.1} parent=11 // pred_check_branch
        %136 = sbr.rel (%p134) target = $region16
      $region15: #{position_encoding.1} parent=11 // pred_region
        _
      $region16: #{position_encoding.1} parent=11 // pred_fallthru
        _
      // Predicated region
      $region17: #{position_encoding.1} parent=11 // pred_check
        %p137 = pneg %p91
      $region18: #{position_encoding.1} parent=11 // pred_check_branch
        %139 = sbr.rel (%p137) target = $region20
      $region19: #{position_encoding.1} parent=11 // pred_region
        _
      $region20: #{position_encoding.1} parent=11 // pred_fallthru
        _
    $region12: #{position_encoding.1} parent=5 // pred_fallthru
      _
    %p140 = scmp.lt.s32.totalorder %s9, 2
    // Predicated region
    $region21: #{position_encoding.1} parent=5 // pred_check
      %p141 = pneg %p140
    $region22: #{position_encoding.1} parent=5 // pred_check_branch
      %143 = sbr.rel (%p141) target = $region24
    $region23: #{position_encoding.1} parent=5 // pred_region
      // Predicated region
      $region25: #{position_encoding.1} parent=23 // pred_check
        %p144 = pneg %p43
      $region26: #{position_encoding.1} parent=23 // pred_check_branch
        %146 = sbr.rel (%p144) target = $region28
      $region27: #{position_encoding.1} parent=23 // pred_region
        %p147 = scmp.lt.s32.totalorder %s16, 1
        %s148 = scalar_select %p147, %s16, 1
        %p149 = scmp.lt.s32.totalorder %s17, 0
        %s150 = scalar_select %p149, %s17, 0
        %s151 = sadd.s32 %s150, %s148
        %s152 = smul.addr %s151, 4
        %s153 = scalar_lea.vmem %s0, %s152
      $region28: #{position_encoding.1} parent=23 // pred_fallthru
        _
    $region24: #{position_encoding.1} parent=5 // pred_fallthru
      _
    %p154 = scmp.le.s32.totalorder 1, %s9
    %p155 = scmp.lt.s32.totalorder %s9, 3
    %p156 = pnand %p154, %p155
    %p157 = pneg %p156
    // Predicated region
    $region29: #{position_encoding.1} parent=5 // pred_check
      _
    $region30: #{position_encoding.1} parent=5 // pred_check_branch
      %159 = sbr.rel (%p156) target = $region32
    $region31: #{position_encoding.1} parent=5 // pred_region
      %s160 = ssub.s32 %s9, 1
      %p161 = scmp.lt.s32.totalorder %s18, 1
      %s162 = scalar_select %p161, %s18, 1
      %p163 = scmp.lt.s32.totalorder %s19, 0
      %s164 = scalar_select %p163, %s19, 0
      %s165 = sadd.s32 %s164, %s162
      %s166 = smul.addr %s165, 4
      %s167 = scalar_lea.vmem %s0, %s166
      %p168 = pneg %p49
      %p169 = pneg %p46
      %p170 = pneg %p70
      %p171 = pneg %p67
      %p172 = pneg %p91
      %p173 = pneg %p88
      %p174 = pneg %p119
      %p175 = pneg %p116
      %p176 = scmp.lt.s32.totalorder %s18, 1
      %s177 = scalar_select %p176, %s18, 1
      %p178 = scmp.lt.s32.totalorder %s19, 0
      %s179 = scalar_select %p178, %s19, 0
      %s180 = smul.addr %s177, 4
      %s181 = sadd.s32 %s179, %s180
      %s182 = smul.addr %s181, 8
      %s183 = scalar_lea.vmem %s3, %s182
      %p184 = scmp.lt.s32.totalorder %s18, 1
      %s185 = scalar_select %p184, %s18, 1
      %p186 = scmp.lt.s32.totalorder %s19, 0
      %s187 = scalar_select %p186, %s19, 0
      %s188 = sadd.s32 %s187, %s185
      %s189 = smul.addr %s188, 4
      %s190 = scalar_lea.vmem %s0, %s189
      %p191 = scmp.lt.s32.totalorder %s18, 1
      %s192 = scalar_select %p191, %s18, 1
      %p193 = scmp.lt.s32.totalorder %s19, 0
      %s194 = scalar_select %p193, %s19, 0
      %s195 = smul.addr %s192, 4
      %s196 = sadd.s32 %s194, %s195
      %s197 = smul.addr %s196, 8
      %s198 = scalar_lea.vmem %s3, %s197
      %v199 = vld [vmem:[%s190] sm:$0x7]
      %v200 = vld [vmem:[%s1] sm:$0xff]
      %v201 = vld [vmem:[%s1 + $0x8] sm:$0xff]
      %v202 = vld [vmem:[%s1 + $0x10] sm:$0xff]
      %v203 = vld [vmem:[%s1 + $0x18] sm:$0xff]
      %vm204 = vcmask 23552
      %v206 = vsel %vm204, %v200, 0
      %v209 = vsel %vm204, %v201, 0
      %v212 = vsel %vm204, %v202, 0
      %v215 = vsel %vm204, %v203, 0
      %vm217 = vcmask 1042432
      %v219 = vsel %vm217, %v199, 0
      %221 = vmatprep.subr.mxu0 0.0
      %222 = vmatpush1.msra.mxu0 %v219
      %223 = vmatprep.subr.mxu0 0.0
      %224 = vmatpush1.msra.mxu0 0.0
      %225 = vmatprep.subr.mxu0 0.0
      %226 = vmatpush1.msra.mxu0 0.0
      %227 = vmatprep.subr.mxu0 0.0
      %228 = vmatpush1.msra.mxu0 0.0
      %229 = vmatprep.subr.mxu0 0.0
      %230 = vmatpush1.msra.mxu0 0.0
      %231 = vmatprep.subr.mxu0 0.0
      %232 = vmatpush1.msra.mxu0 0.0
      %233 = vmatprep.subr.mxu0 0.0
      %234 = vmatpush1.msra.mxu0 0.0
      %235 = vmatprep.subr.mxu0 0.0
      %236 = vmatpush1.msra.mxu0 0.0
      %237 = vmatprep.subr.mxu0 0.0
      %238 = vmatpush1.msra.mxu0 0.0
      %239 = vmatprep.subr.mxu0 0.0
      %240 = vmatpush1.msra.mxu0 0.0
      %241 = vmatprep.subr.mxu0 0.0
      %242 = vmatpush1.msra.mxu0 0.0
      %243 = vmatprep.subr.mxu0 0.0
      %244 = vmatpush1.msra.mxu0 0.0
      %245 = vmatprep.subr.mxu0 0.0
      %246 = vmatpush1.msra.mxu0 0.0
      %247 = vmatprep.subr.mxu0 0.0
      %248 = vmatpush1.msra.mxu0 0.0
      %249 = vmatprep.subr.mxu0 0.0
      %250 = vmatpush1.msra.mxu0 0.0
      %251 = vmatprep.subr.mxu0 0.0
      %252 = vmatpush1.msra.mxu0 0.0
      %253 = vmatprep.subr.mxu0 0.0
      %254 = vmatpush1.msra.mxu0 0.0
      %255 = vmatprep.subr.mxu0 0.0
      %256 = vmatpush1.msra.mxu0 0.0
      %257 = vmatprep.subr.mxu0 0.0
      %258 = vmatpush1.msra.mxu0 0.0
      %259 = vmatprep.subr.mxu0 0.0
      %260 = vmatpush1.msra.mxu0 0.0
      %261 = vmatprep.subr.mxu0 0.0
      %262 = vmatpush1.msra.mxu0 0.0
      %263 = vmatprep.subr.mxu0 0.0
      %264 = vmatpush1.msra.mxu0 0.0
      %265 = vmatprep.subr.mxu0 0.0
      %266 = vmatpush1.msra.mxu0 0.0
      %267 = vmatprep.subr.mxu0 0.0
      %268 = vmatpush1.msra.mxu0 0.0
      %269 = vmatprep.subr.mxu0 0.0
      %270 = vmatpush1.msra.mxu0 0.0
      %271 = vmatprep.subr.mxu0 0.0
      %272 = vmatpush1.msra.mxu0 0.0
      %273 = vmatprep.subr.mxu0 0.0
      %274 = vmatpush1.msra.mxu0 0.0
      %275 = vmatprep.subr.mxu0 0.0
      %276 = vmatpush1.msra.mxu0 0.0
      %277 = vmatprep.subr.mxu0 0.0
      %278 = vmatpush1.msra.mxu0 0.0
      %279 = vmatprep.subr.mxu0 0.0
      %280 = vmatpush1.msra.mxu0 0.0
      %281 = vmatprep.subr.mxu0 0.0
      %282 = vmatpush1.msra.mxu0 0.0
      %283 = vmatprep.subr.mxu0 0.0
      %284 = vmatpush1.msra.mxu0 0.0
      %285 = vmatprep.mubr.f32.mxu0 0.0
      %286 = vmatmul.mubr.f32.gmra.mrb[0].mxu0 %v206
      %v287 = vpop.f32.mrb[0].mxu0
      %v288 = vadd.f32 0.0, %v287
      %v289 = vpop.f32.mrb[0].mxu0
      %290 = vmatprep.mubr.f32.mxu0 0.0
      %291 = vmatmul.mubr.f32.gmra.mrb[0].mxu0 %v209
      %v292 = vpop.f32.mrb[0].mxu0
      %v293 = vadd.f32 0.0, %v292
      %v294 = vpop.f32.mrb[0].mxu0
      %295 = vmatprep.mubr.f32.mxu0 0.0
      %296 = vmatmul.mubr.f32.gmra.mrb[0].mxu0 %v212
      %v297 = vpop.f32.mrb[0].mxu0
      %v298 = vadd.f32 0.0, %v297
      %v299 = vpop.f32.mrb[0].mxu0
      %300 = vmatprep.mubr.f32.mxu0 0.0
      %301 = vmatmul.mubr.f32.gmra.mrb[0].mxu0 %v215
      %v302 = vpop.f32.mrb[0].mxu0
      %v303 = vadd.f32 0.0, %v302
      %v304 = vpop.f32.mrb[0].mxu0
      %305 = vdwg.mxu0
      %v306 = vmax.f32 %v288, 0.0
      %v307 = vmax.f32 %v293, 0.0
      %v308 = vmax.f32 %v298, 0.0
      %v309 = vmax.f32 %v303, 0.0
      %v310 = vld [vmem:[%s2] sm:$0xff]
      %v311 = vld [vmem:[%s2 + $0x8] sm:$0xff]
      %v312 = vld [vmem:[%s2 + $0x10] sm:$0xff]
      %v313 = vld [vmem:[%s2 + $0x18] sm:$0xff]
      %vm314 = vcmask 261120
      %v316 = vsel %vm314, %v310, 0
      %v319 = vsel %vm314, %v311, 0
      %v322 = vsel %vm314, %v312, 0
      %v325 = vsel %vm314, %v313, 0
      %327 = vmatprep.subr.mxu0 0.0
      %328 = vmatpush1.msra.mxu0 %v306
      %329 = vmatprep.subr.mxu0 0.0
      %330 = vmatpush1.msra.mxu0 %v307
      %331 = vmatprep.subr.mxu0 0.0
      %332 = vmatpush1.msra.mxu0 %v308
      %333 = vmatprep.subr.mxu0 0.0
      %334 = vmatpush1.msra.mxu0 %v309
      %335 = vmatprep.subr.mxu0 0.0
      %336 = vmatpush1.msra.mxu0 0.0
      %337 = vmatprep.subr.mxu0 0.0
      %338 = vmatpush1.msra.mxu0 0.0
      %339 = vmatprep.subr.mxu0 0.0
      %340 = vmatpush1.msra.mxu0 0.0
      %341 = vmatprep.subr.mxu0 0.0
      %342 = vmatpush1.msra.mxu0 0.0
      %343 = vmatprep.subr.mxu0 0.0
      %344 = vmatpush1.msra.mxu0 0.0
      %345 = vmatprep.subr.mxu0 0.0
      %346 = vmatpush1.msra.mxu0 0.0
      %347 = vmatprep.subr.mxu0 0.0
      %348 = vmatpush1.msra.mxu0 0.0
      %349 = vmatprep.subr.mxu0 0.0
      %350 = vmatpush1.msra.mxu0 0.0
      %351 = vmatprep.subr.mxu0 0.0
      %352 = vmatpush1.msra.mxu0 0.0
      %353 = vmatprep.subr.mxu0 0.0
      %354 = vmatpush1.msra.mxu0 0.0
      %355 = vmatprep.subr.mxu0 0.0
      %356 = vmatpush1.msra.mxu0 0.0
      %357 = vmatprep.subr.mxu0 0.0
      %358 = vmatpush1.msra.mxu0 0.0
      %359 = vmatprep.subr.mxu0 0.0
      %360 = vmatpush1.msra.mxu0 0.0
      %361 = vmatprep.subr.mxu0 0.0
      %362 = vmatpush1.msra.mxu0 0.0
      %363 = vmatprep.subr.mxu0 0.0
      %364 = vmatpush1.msra.mxu0 0.0
      %365 = vmatprep.subr.mxu0 0.0
      %366 = vmatpush1.msra.mxu0 0.0
      %367 = vmatprep.subr.mxu0 0.0
      %368 = vmatpush1.msra.mxu0 0.0
      %369 = vmatprep.subr.mxu0 0.0
      %370 = vmatpush1.msra.mxu0 0.0
      %371 = vmatprep.subr.mxu0 0.0
      %372 = vmatpush1.msra.mxu0 0.0
      %373 = vmatprep.subr.mxu0 0.0
      %374 = vmatpush1.msra.mxu0 0.0
      %375 = vmatprep.subr.mxu0 0.0
      %376 = vmatpush1.msra.mxu0 0.0
      %377 = vmatprep.subr.mxu0 0.0
      %378 = vmatpush1.msra.mxu0 0.0
      %379 = vmatprep.subr.mxu0 0.0
      %380 = vmatpush1.msra.mxu0 0.0
      %381 = vmatprep.subr.mxu0 0.0
      %382 = vmatpush1.msra.mxu0 0.0
      %383 = vmatprep.subr.mxu0 0.0
      %384 = vmatpush1.msra.mxu0 0.0
      %385 = vmatprep.subr.mxu0 0.0
      %386 = vmatpush1.msra.mxu0 0.0
      %387 = vmatprep.subr.mxu0 0.0
      %388 = vmatpush1.msra.mxu0 0.0
      %389 = vmatprep.subr.mxu0 0.0
      %390 = vmatpush1.msra.mxu0 0.0
      %391 = vmatprep.mubr.f32.mxu0 0.0
      %392 = vmatmul.mubr.f32.gmra.mrb[0].mxu0 %v316
      %v393 = vpop.f32.mrb[0].mxu0
      %v394 = vadd.f32 0.0, %v393
      %v395 = vpop.f32.mrb[0].mxu0
      %396 = vmatprep.mubr.f32.mxu0 0.0
      %397 = vmatmul.mubr.f32.gmra.mrb[0].mxu0 %v319
      %v398 = vpop.f32.mrb[0].mxu0
      %v399 = vadd.f32 0.0, %v398
      %v400 = vpop.f32.mrb[0].mxu0
      %401 = vmatprep.mubr.f32.mxu0 0.0
      %402 = vmatmul.mubr.f32.gmra.mrb[0].mxu0 %v322
      %v403 = vpop.f32.mrb[0].mxu0
      %v404 = vadd.f32 0.0, %v403
      %v405 = vpop.f32.mrb[0].mxu0
      %406 = vmatprep.mubr.f32.mxu0 0.0
      %407 = vmatmul.mubr.f32.gmra.mrb[0].mxu0 %v325
      %v408 = vpop.f32.mrb[0].mxu0
      %v409 = vadd.f32 0.0, %v408
      %v410 = vpop.f32.mrb[0].mxu0
      %411 = vdwg.mxu0
      %412 = vst [vmem:[%s198] sm:$0xff] %v394
      %413 = vst [vmem:[%s198 + $0x8] sm:$0xff] %v399
      %414 = vst [vmem:[%s198 + $0x10] sm:$0xff] %v404
      %415 = vst [vmem:[%s198 + $0x18] sm:$0xff] %v409
      %p416 = scmp.lt.s32.totalorder %s18, 1
      %s417 = scalar_select %p416, %s18, 1
      %p418 = scmp.lt.s32.totalorder %s19, 0
      %s419 = scalar_select %p418, %s19, 0
      %s420 = smul.addr %s417, 4
      %s421 = sadd.s32 %s419, %s420
      %s422 = smul.addr %s421, 8
      %s423 = scalar_lea.vmem %s3, %s422
      // Predicated region
      $region33: #{position_encoding.1} parent=31 // pred_check
        %p424 = pneg %p116
      $region34: #{position_encoding.1} parent=31 // pred_check_branch
        %426 = sbr.rel (%p424) target = $region36
      $region35: #{position_encoding.1} parent=31 // pred_region
        _
      $region36: #{position_encoding.1} parent=31 // pred_fallthru
        _
    $region32: #{position_encoding.1} parent=5 // pred_fallthru
      _
    %p427 = scmp.le.s32.totalorder 2, %s9
    // Predicated region
    $region37: #{position_encoding.1} parent=5 // pred_check
      %p428 = pneg %p427
    $region38: #{position_encoding.1} parent=5 // pred_check_branch
      %430 = sbr.rel (%p428) target = $region40
    $region39: #{position_encoding.1} parent=5 // pred_region
      %s431 = ssub.s32 %s9, 2
      // Predicated region
      $region41: #{position_encoding.1} parent=39 // pred_check
        %p432 = pneg %p122
      $region42: #{position_encoding.1} parent=39 // pred_check_branch
        %434 = sbr.rel (%p432) target = $region44
      $region43: #{position_encoding.1} parent=39 // pred_region
        %p435 = scmp.lt.s32.totalorder %s20, 1
        %s436 = scalar_select %p435, %s20, 1
        %p437 = scmp.lt.s32.totalorder %s21, 0
        %s438 = scalar_select %p437, %s21, 0
        %s439 = smul.addr %s436, 4
        %s440 = sadd.s32 %s438, %s439
        %s441 = smul.addr %s440, 8
        %s442 = scalar_lea.vmem %s3, %s441
      $region44: #{position_encoding.1} parent=39 // pred_fallthru
        _
    $region40: #{position_encoding.1} parent=5 // pred_fallthru
      _
  $region6: #{position_encoding.1} parent=0 // loop_footer
    %s13 = sadd.s32 1, %s9
  $region7: #{position_encoding.1} parent=0 // loop_footer_branch
    %8 = sbr.rel target = $region3
  $region8: #{position_encoding.1} parent=0 // loop_exit
    _

</llo_original>
